<compile_context>
chip_gen: v7x
topology: tpu7x:2x2x1
jax: 0.10.0
libtpu: 0.0.40
codegen_flags: <defaults>
</compile_context>

<pallas_src>
import jax
import jax.numpy as jnp
from jax.experimental import pallas as pl
from jax.experimental.pallas import tpu as pltpu

# Deterministic weights from the module's __init__ (symmetric, so conv == cross-correlation).
KERNEL_3x3 = (
    (0.03797616, 0.044863533, 0.03797616),
    (0.044863533, 0.053, 0.044863533),
    (0.03797616, 0.044863533, 0.03797616),
)
PAD = 2          # F.conv2d(..., padding=2)
KSZ = 3


def _blur_kernel(x_ref, o_ref, xp_ref):
    # x_ref:  (3, H, W)       unpadded channels 0..2 of one image (VMEM block)
    # o_ref:  (3, H+2, W+2)   output block
    # xp_ref: (3, H+4, W+4)   f32 VMEM scratch holding the zero-padded halo
    _, h, w = x_ref.shape
    _, ho, wo = o_ref.shape

    # Build the 2-pixel halo on-chip (no extra HBM pass): zero the scratch, then
    # drop the image into its interior.
    xp_ref[...] = jnp.zeros_like(xp_ref)
    xp_ref[:, pl.ds(PAD, h), pl.ds(PAD, w)] = x_ref[...].astype(jnp.float32)

    # 3x3 conv as 9 shifted multiply-accumulates on the VMEM-resident padded plane.
    # First tap folds into the accumulator init (no zeros + add).
    acc = KERNEL_3x3[0][0] * xp_ref[:, pl.ds(0, ho), pl.ds(0, wo)]
    for di in range(KSZ):
        for dj in range(KSZ):
            if di == 0 and dj == 0:
                continue
            acc = acc + KERNEL_3x3[di][dj] * xp_ref[:, pl.ds(di, ho), pl.ds(dj, wo)]

    o_ref[...] = acc.astype(o_ref.dtype)


def gaussian_blur(x):
    """x: (N, C, H, W) with C >= 3; uses channels 0..2 like the PyTorch module.

    Returns (N, 3, H + 2, W + 2): padding=2 with a 3x3 kernel grows spatial dims by 2.
    """
    n, c, h, w = x.shape
    assert c >= 3, "GaussianBlur forward indexes channels 0, 1, 2"
    ho, wo = h + 2 * PAD - KSZ + 1, w + 2 * PAD - KSZ + 1   # = h + 2, w + 2
    hp, wp = h + 2 * PAD, w + 2 * PAD

    # TODO(synk): for very large images (whole f32 planes approaching the scoped VMEM
    # limit, e.g. ~>1400x1400 on v7x), add a row-tile grid axis with a 2-row halo
    # instead of whole-plane blocks.
    return pl.pallas_call(
        _blur_kernel,
        out_shape=jax.ShapeDtypeStruct((n, 3, ho, wo), x.dtype),
        grid=(n,),
        in_specs=[
            # Channel block of size 3 at block index 0 selects channels 0..2 directly
            # from the original NCHW tensor (no materialized x[:, :3] slice); spatial
            # dims are whole-plane blocks (== full array dims, so no (8,128) issue).
            pl.BlockSpec((None, 3, h, w), lambda i: (i, 0, 0, 0)),
        ],
        out_specs=pl.BlockSpec((None, 3, ho, wo), lambda i: (i, 0, 0, 0)),
        scratch_shapes=[pltpu.VMEM((3, hp, wp), jnp.float32)],
        compiler_params=pltpu.CompilerParams(
            dimension_semantics=("parallel",)
        ),
    )(x)


def _reference(x):
    # Pure-JAX reference (cross-correlation, matching F.conv2d semantics).
    w = jnp.asarray(KERNEL_3x3, jnp.float32)[None, None]  # (1,1,3,3)
    x3 = x[:, :3].astype(jnp.float32)
    n, c, h, wd = x3.shape
    xr = x3.reshape(n * c, 1, h, wd)
    y = jax.lax.conv_general_dilated(
        xr, w, window_strides=(1, 1), padding=((PAD, PAD), (PAD, PAD)),
        dimension_numbers=("NCHW", "OIHW", "NCHW"),
    )
    return y.reshape(n, c, h + 2, wd + 2).astype(x.dtype)


if __name__ == "__main__":
    key = jax.random.PRNGKey(0)
    # N=2, C=4 (forward only uses channels 0..2 — exercises the slice-free BlockSpec),
    # 16x16 spatial.
    x = jax.random.normal(key, (2, 4, 16, 16), dtype=jnp.float32)

    y = jax.block_until_ready(gaussian_blur(x))

    y_ref = _reference(x)
    assert y.shape == (2, 3, 18, 18)
    assert jnp.allclose(y, y_ref, atol=1e-5, rtol=1e-5)
    print("KERNEL_OK")
</pallas_src>

<mosaic_0001>
module attributes {stable_mosaic.version = 11 : i64} {
  func.func @_blur_kernel(%arg0: i32, %arg1: memref<1x3x16x16xf32, #tpu.memory_space<vmem>>, %arg2: memref<1x3x18x18xf32, #tpu.memory_space<vmem>>, %arg3: memref<3x20x20xf32, #tpu.memory_space<vmem>>) attributes {dimension_semantics = [#tpu.dimension_semantics<parallel>], iteration_bounds = array<i64: 2>, scalar_prefetch = 0 : i64, scratch_operands = 1 : i64, tpu.core_type = #tpu.core_type<tc>, window_params = [{transform_indices = @transform_0, window_bounds = array<i64: 1, 3, 16, 16>}, {transform_indices = @transform_1, window_bounds = array<i64: 1, 3, 18, 18>}]} {
    %cst = arith.constant 0.000000e+00 : f32
    %0 = vector.broadcast %cst : f32 to vector<3x20x20xf32>
    %c0 = arith.constant 0 : index
    %c0_0 = arith.constant 0 : index
    %c0_1 = arith.constant 0 : index
    %1 = vector.load %arg3[%c0, %c0_0, %c0_1] : memref<3x20x20xf32, #tpu.memory_space<vmem>>, vector<3x20x20xf32>
    tpu.vector_store %arg3[%c0, %c0_0, %c0_1], %0 {strides = array<i32>} : memref<3x20x20xf32, #tpu.memory_space<vmem>>, vector<3x20x20xf32>,
    %c0_2 = arith.constant 0 : index
    %c0_3 = arith.constant 0 : index
    %c0_4 = arith.constant 0 : index
    %c0_5 = arith.constant 0 : index
    %2 = vector.load %arg1[%c0_2, %c0_3, %c0_4, %c0_5] : memref<1x3x16x16xf32, #tpu.memory_space<vmem>>, vector<1x3x16x16xf32>
    %3 = vector.shape_cast %2 : vector<1x3x16x16xf32> to vector<3x16x16xf32>
    %c0_6 = arith.constant 0 : index
    %c2 = arith.constant 2 : index
    %c2_7 = arith.constant 2 : index
    %4 = vector.load %arg3[%c0_6, %c2, %c2_7] : memref<3x20x20xf32, #tpu.memory_space<vmem>>, vector<3x16x16xf32>
    tpu.vector_store %arg3[%c0_6, %c2, %c2_7], %3 {strides = array<i32>} : memref<3x20x20xf32, #tpu.memory_space<vmem>>, vector<3x16x16xf32>,
    %c0_8 = arith.constant 0 : index
    %c0_9 = arith.constant 0 : index
    %c0_10 = arith.constant 0 : index
    %5 = vector.load %arg3[%c0_8, %c0_9, %c0_10] : memref<3x20x20xf32, #tpu.memory_space<vmem>>, vector<3x18x18xf32>
    %cst_11 = arith.constant 0.0379761606 : f32
    %6 = vector.broadcast %cst_11 : f32 to vector<3x18x18xf32>
    %7 = arith.mulf %6, %5 : vector<3x18x18xf32>
    %c0_12 = arith.constant 0 : index
    %c0_13 = arith.constant 0 : index
    %c1 = arith.constant 1 : index
    %8 = vector.load %arg3[%c0_12, %c0_13, %c1] : memref<3x20x20xf32, #tpu.memory_space<vmem>>, vector<3x18x18xf32>
    %cst_14 = arith.constant 0.0448635332 : f32
    %9 = vector.broadcast %cst_14 : f32 to vector<3x18x18xf32>
    %10 = arith.mulf %9, %8 : vector<3x18x18xf32>
    %11 = arith.addf %7, %10 : vector<3x18x18xf32>
    %c0_15 = arith.constant 0 : index
    %c0_16 = arith.constant 0 : index
    %c2_17 = arith.constant 2 : index
    %12 = vector.load %arg3[%c0_15, %c0_16, %c2_17] : memref<3x20x20xf32, #tpu.memory_space<vmem>>, vector<3x18x18xf32>
    %cst_18 = arith.constant 0.0379761606 : f32
    %13 = vector.broadcast %cst_18 : f32 to vector<3x18x18xf32>
    %14 = arith.mulf %13, %12 : vector<3x18x18xf32>
    %15 = arith.addf %11, %14 : vector<3x18x18xf32>
    %c0_19 = arith.constant 0 : index
    %c1_20 = arith.constant 1 : index
    %c0_21 = arith.constant 0 : index
    %16 = vector.load %arg3[%c0_19, %c1_20, %c0_21] : memref<3x20x20xf32, #tpu.memory_space<vmem>>, vector<3x18x18xf32>
    %cst_22 = arith.constant 0.0448635332 : f32
    %17 = vector.broadcast %cst_22 : f32 to vector<3x18x18xf32>
    %18 = arith.mulf %17, %16 : vector<3x18x18xf32>
    %19 = arith.addf %15, %18 : vector<3x18x18xf32>
    %c0_23 = arith.constant 0 : index
    %c1_24 = arith.constant 1 : index
    %c1_25 = arith.constant 1 : index
    %20 = vector.load %arg3[%c0_23, %c1_24, %c1_25] : memref<3x20x20xf32, #tpu.memory_space<vmem>>, vector<3x18x18xf32>
    %cst_26 = arith.constant 5.300000e-02 : f32
    %21 = vector.broadcast %cst_26 : f32 to vector<3x18x18xf32>
    %22 = arith.mulf %21, %20 : vector<3x18x18xf32>
    %23 = arith.addf %19, %22 : vector<3x18x18xf32>
    %c0_27 = arith.constant 0 : index
    %c1_28 = arith.constant 1 : index
    %c2_29 = arith.constant 2 : index
    %24 = vector.load %arg3[%c0_27, %c1_28, %c2_29] : memref<3x20x20xf32, #tpu.memory_space<vmem>>, vector<3x18x18xf32>
    %cst_30 = arith.constant 0.0448635332 : f32
    %25 = vector.broadcast %cst_30 : f32 to vector<3x18x18xf32>
    %26 = arith.mulf %25, %24 : vector<3x18x18xf32>
    %27 = arith.addf %23, %26 : vector<3x18x18xf32>
    %c0_31 = arith.constant 0 : index
    %c2_32 = arith.constant 2 : index
    %c0_33 = arith.constant 0 : index
    %28 = vector.load %arg3[%c0_31, %c2_32, %c0_33] : memref<3x20x20xf32, #tpu.memory_space<vmem>>, vector<3x18x18xf32>
    %cst_34 = arith.constant 0.0379761606 : f32
    %29 = vector.broadcast %cst_34 : f32 to vector<3x18x18xf32>
    %30 = arith.mulf %29, %28 : vector<3x18x18xf32>
    %31 = arith.addf %27, %30 : vector<3x18x18xf32>
    %c0_35 = arith.constant 0 : index
    %c2_36 = arith.constant 2 : index
    %c1_37 = arith.constant 1 : index
    %32 = vector.load %arg3[%c0_35, %c2_36, %c1_37] : memref<3x20x20xf32, #tpu.memory_space<vmem>>, vector<3x18x18xf32>
    %cst_38 = arith.constant 0.0448635332 : f32
    %33 = vector.broadcast %cst_38 : f32 to vector<3x18x18xf32>
    %34 = arith.mulf %33, %32 : vector<3x18x18xf32>
    %35 = arith.addf %31, %34 : vector<3x18x18xf32>
    %c0_39 = arith.constant 0 : index
    %c2_40 = arith.constant 2 : index
    %c2_41 = arith.constant 2 : index
    %36 = vector.load %arg3[%c0_39, %c2_40, %c2_41] : memref<3x20x20xf32, #tpu.memory_space<vmem>>, vector<3x18x18xf32>
    %cst_42 = arith.constant 0.0379761606 : f32
    %37 = vector.broadcast %cst_42 : f32 to vector<3x18x18xf32>
    %38 = arith.mulf %37, %36 : vector<3x18x18xf32>
    %39 = arith.addf %35, %38 : vector<3x18x18xf32>
    %c0_43 = arith.constant 0 : index
    %c0_44 = arith.constant 0 : index
    %c0_45 = arith.constant 0 : index
    %c0_46 = arith.constant 0 : index
    %40 = vector.load %arg2[%c0_43, %c0_44, %c0_45, %c0_46] : memref<1x3x18x18xf32, #tpu.memory_space<vmem>>, vector<1x3x18x18xf32>
    %41 = vector.shape_cast %40 : vector<1x3x18x18xf32> to vector<3x18x18xf32>
    %42 = vector.shape_cast %39 : vector<3x18x18xf32> to vector<1x3x18x18xf32>
    tpu.vector_store %arg2[%c0_43, %c0_44, %c0_45, %c0_46], %42 {strides = array<i32>} : memref<1x3x18x18xf32, #tpu.memory_space<vmem>>, vector<1x3x18x18xf32>,
    return
  }
  func.func @transform_0(%arg0: i32) -> (i32, i32, i32, i32) {
    %c0_i32 = arith.constant 0 : i32
    %c0_i32_0 = arith.constant 0 : i32
    %c0_i32_1 = arith.constant 0 : i32
    %c0_i32_2 = arith.constant 0 : i32
    return %arg0, %c0_i32, %c0_i32_0, %c0_i32_1 : i32, i32, i32, i32
  }
  func.func @transform_1(%arg0: i32) -> (i32, i32, i32, i32) {
    %c0_i32 = arith.constant 0 : i32
    %c0_i32_0 = arith.constant 0 : i32
    %c0_i32_1 = arith.constant 0 : i32
    %c0_i32_2 = arith.constant 0 : i32
    return %arg0, %c0_i32, %c0_i32_0, %c0_i32_1 : i32, i32, i32, i32
  }
}

</mosaic_0001>

<llo_original>
// kernel: tpu_custom_call.1
$region0: #{tpu_custom_call.1}
  #allocation0 [shape = 'u32[]', space=smem, size = 0x4, offset = 0x4, fixed_abs, tag = 'smem constant byte address 0x4 - core index']
  #allocation1 [shape = 'u32[144,128]{1,0:T(1,128)}', space=vmem, size = 0x12000, scoped, tag = 'internal scratch']
  #allocation2 [shape = 'f32[3,20,20]{2,1,0:T(8,128)}', space=vmem, size = 0x9000, scoped, tag = 'scratch operand']
  %s0 = inlined_call_operand.hbm [shape: f32[2,4,16,16], index: 0, kind: input, shape index: {}]
  %s1 = inlined_call_operand.vmem [shape: f32[2,3,18,18], index: 1, kind: output, shape index: {}]
  %s2 = sld [smem:[#allocation0]]
  $region41: #{tpu_custom_call.1} parent=0
    _
  %s4 = ssub.s32 1, %s2
  %s5 = scalar_select 0, %s4, %s2
  $region1: #{tpu_custom_call.1} parent=0
    #allocation3 [shape = 'u8[49152]{0}', space=vmem, size = 0xc000, scoped, tag = 'input window, operand 0']
    #allocation4 [shape = 's32[2]{0}', space=sflag, size = 0x8, scoped, tag = 'scoped memory for tpu_custom_call.1']
    %6 = vsyncpa [#allocation4], 0
    %s7 = scalar_lea.sflag [#allocation4], 1
    %8 = vsyncpa %s7, 0
    loop: start=0, step=1, limit=4
    $region2: #{tpu_custom_call.1} parent=1 // loop_pre_header
      _
    $region3: #{tpu_custom_call.1} parent=1 // loop_header
      %s10 = sphi 0, %s14
      %p11 = scmp.ge.s32.totalorder %s10, 4
      %s20 = sphi 0, %s22
      %s23 = sphi 0, %s20
      %s24 = sphi 0, %s23
      %s40 = sphi 0, %s24
      %s46 = sphi 0, %s48
      %s49 = sphi 0, %s46
      %s50 = sphi 0, %s49
      %s66 = sphi 0, %s50
    $region4: #{tpu_custom_call.1} parent=1 // loop_header_branch
      %13 = sbr.rel (%p11) target = $region8
    $region5: #{tpu_custom_call.1} parent=1 // loop_body
      %s15 = ssub.s32 %s10, 1
      %s16 = ssub.s32 %s10, 2
      %s17 = sadd.s32 %s10, 1
      %s18 = ssub.s32 %s10, %s17
      %p19 = scmp.eq.s32.totalorder %s18, 0
      %s21 = sadd.s32 %s20, 1
      %s22 = scalar_select %p19, %s20, %s21
      %p25 = pneg %p19
      %p26 = scmp.eq.s32.totalorder %s10, 1
      %p27 = por %p25, %p26
      %p28 = scmp.ne.s32.totalorder %s20, %s23
      %p29 = scmp.eq.s32.totalorder %s10, 0
      %p30 = por %p28, %p29
      %p31 = scmp.ne.s32.totalorder %s20, %s23
      %p32 = scmp.eq.s32.totalorder %s15, 1
      %p33 = por %p31, %p32
      %p34 = scmp.ne.s32.totalorder %s23, %s24
      %p35 = scmp.eq.s32.totalorder %s15, 0
      %p36 = por %p34, %p35
      %p37 = scmp.ne.s32.totalorder %s23, %s24
      %p38 = scmp.eq.s32.totalorder %s16, 1
      %p39 = por %p37, %p38
      %p41 = scmp.ne.s32.totalorder %s24, %s40
      %p42 = scmp.eq.s32.totalorder %s16, 0
      %p43 = por %p41, %p42
      %s44 = ssub.s32 %s10, %s17
      %p45 = scmp.eq.s32.totalorder %s44, 0
      %s47 = sadd.s32 %s46, 1
      %s48 = scalar_select %p45, %s46, %s47
      %p51 = pneg %p45
      %p52 = scmp.eq.s32.totalorder %s10, 1
      %p53 = por %p51, %p52
      %p54 = scmp.ne.s32.totalorder %s46, %s49
      %p55 = scmp.eq.s32.totalorder %s10, 0
      %p56 = por %p54, %p55
      %p57 = scmp.ne.s32.totalorder %s46, %s49
      %p58 = scmp.eq.s32.totalorder %s15, 1
      %p59 = por %p57, %p58
      %p60 = scmp.ne.s32.totalorder %s49, %s50
      %p61 = scmp.eq.s32.totalorder %s15, 0
      %p62 = por %p60, %p61
      %p63 = scmp.ne.s32.totalorder %s49, %s50
      %p64 = scmp.eq.s32.totalorder %s16, 1
      %p65 = por %p63, %p64
      %p67 = scmp.ne.s32.totalorder %s50, %s66
      %p68 = scmp.eq.s32.totalorder %s16, 0
      %p69 = por %p67, %p68
      %p70 = scmp.le.s32.totalorder 1, %s10
      %p71 = scmp.lt.s32.totalorder %s10, 3
      %p72 = pnand %p70, %p71
      %p73 = pneg %p72
      // Predicated region
      $region9: #{tpu_custom_call.1} parent=5 // pred_check
        _
      $region10: #{tpu_custom_call.1} parent=5 // pred_check_branch
        %75 = sbr.rel (%p72) target = $region12
      $region11: #{tpu_custom_call.1} parent=5 // pred_region
        %s76 = ssub.s32 %s10, 1
      $region12: #{tpu_custom_call.1} parent=5 // pred_fallthru
        _
      %p77 = scmp.lt.s32.totalorder %s10, 2
      // Predicated region
      $region13: #{tpu_custom_call.1} parent=5 // pred_check
        %p78 = pneg %p77
      $region14: #{tpu_custom_call.1} parent=5 // pred_check_branch
        %80 = sbr.rel (%p78) target = $region16
      $region15: #{tpu_custom_call.1} parent=5 // pred_region
        // Predicated region
        $region17: #{tpu_custom_call.1} parent=15 // pred_check
          %p81 = pneg %p30
        $region18: #{tpu_custom_call.1} parent=15 // pred_check_branch
          %83 = sbr.rel (%p81) target = $region20
        $region19: #{tpu_custom_call.1} parent=15 // pred_region
          %s84 = sand.u32 %s20, 1
          %s85 = scalar_lea.sflag [#allocation4], %s84
          %s86 = sand.u32 %s20, 1
          %s87 = smul.addr %s86, 48
          %s88 = scalar_lea.vmem [#allocation3], %s87
          %s90 = ssub.s32 768, 768
          %91 = vsyncadd %s85, %s90
          %s92 = smul.addr %s10, 8
          %s93 = smul.addr %s92, 128
          %s94 = scalar_lea.hbm %s0, %s93
          %s95 = sshll.u32 %s88, 4
          %s96 = int_to_ptr.vmem [resolvable:$true] %s95
          %101 = dma.hbm_to_vmem [thread:$0]  %s94, 768, %s96, %s85, 128, 128, 8
        $region20: #{tpu_custom_call.1} parent=15 // pred_fallthru
          _
      $region16: #{tpu_custom_call.1} parent=5 // pred_fallthru
        _
      %p102 = scmp.le.s32.totalorder 1, %s10
      %p103 = scmp.lt.s32.totalorder %s10, 3
      %p104 = pnand %p102, %p103
      %p105 = pneg %p104
      // Predicated region
      $region21: #{tpu_custom_call.1} parent=5 // pred_check
        _
      $region22: #{tpu_custom_call.1} parent=5 // pred_check_branch
        %107 = sbr.rel (%p104) target = $region24
      $region23: #{tpu_custom_call.1} parent=5 // pred_region
        %s108 = ssub.s32 %s10, 1
        %s109 = sand.u32 %s23, 1
        %s110 = scalar_lea.sflag [#allocation4], %s109
        %s111 = sand.u32 %s23, 1
        %s112 = smul.addr %s111, 48
        %s113 = scalar_lea.vmem [#allocation3], %s112
        // Predicated region
        $region25: #{tpu_custom_call.1} parent=23 // pred_check
          %p114 = pneg %p36
        $region26: #{tpu_custom_call.1} parent=23 // pred_check_branch
          %116 = sbr.rel (%p114) target = $region28
        $region27: #{tpu_custom_call.1} parent=23 // pred_region
          %117 = dma.done %s110, 768
        $region28: #{tpu_custom_call.1} parent=23 // pred_fallthru
          _
        %s118 = sand.u32 %s23, 1
        %s119 = scalar_lea.sflag [#allocation4], %s118
        %s120 = sand.u32 %s23, 1
        %s121 = smul.addr %s120, 48
        %s122 = scalar_lea.vmem [#allocation3], %s121
        %p123 = pneg %p36
        %p124 = pneg %p33
        %p125 = pneg %p62
        %p126 = pneg %p59
        %p127 = scmp.lt.s32.totalorder %s15, 1
        %s128 = scalar_select %p127, %s15, 1
        %s129 = smul.addr %s128, 9
        %s130 = smul.addr %s129, 8
        %s131 = scalar_lea.vmem %s1, %s130
        %p132 = scmp.lt.s32.totalorder %s15, 1
        %s133 = scalar_select %p132, %s15, 1
        %s134 = smul.addr %s133, 9
        %s135 = smul.addr %s134, 8
        %s136 = scalar_lea.vmem %s1, %s135
        %vm137 = vcmask 162816
        %138 = vst.msk [vmem:[#allocation2] sm:$0xff] %vm137, 0.0
        %139 = vst.msk [vmem:[#allocation2 + $0x8] sm:$0xff] %vm137, 0.0
        %vm140 = vcmask 158720
        %141 = vst.msk [vmem:[#allocation2 + $0x10] sm:$0xf] %vm140, 0.0
        %142 = vst.msk [vmem:[#allocation2 + $0x18] sm:$0xff] %vm137, 0.0
        %143 = vst.msk [vmem:[#allocation2 + $0x20] sm:$0xff] %vm137, 0.0
        %144 = vst.msk [vmem:[#allocation2 + $0x28] sm:$0xf] %vm140, 0.0
        %145 = vst.msk [vmem:[#allocation2 + $0x30] sm:$0xff] %vm137, 0.0
        %146 = vst.msk [vmem:[#allocation2 + $0x38] sm:$0xff] %vm137, 0.0
        %147 = vst.msk [vmem:[#allocation2 + $0x40] sm:$0xf] %vm140, 0.0
        %v148 = vld [vmem:[%s113] sm:$0xff]
        %v149 = vld [vmem:[%s113 + $0x8] sm:$0xff]
        %v150 = vld [vmem:[%s113 + $0x10] sm:$0xff]
        %v151 = vld [vmem:[%s113 + $0x18] sm:$0xff]
        %v152 = vld [vmem:[%s113 + $0x20] sm:$0xff]
        %v153 = vld [vmem:[%s113 + $0x28] sm:$0xff]
        %160 = vrot.lane.b32.xlu0 %v148, 2
        %v161 = vpop.permute.xlu0 %160
        %162 = vrot.lane.b32.xlu0 %v149, 2
        %v163 = vpop.permute.xlu0 %162
        %164 = vrot.lane.b32.xlu0 %v150, 2
        %v165 = vpop.permute.xlu0 %164
        %166 = vrot.lane.b32.xlu0 %v151, 2
        %v167 = vpop.permute.xlu0 %166
        %168 = vrot.lane.b32.xlu0 %v152, 2
        %v169 = vpop.permute.xlu0 %168
        %170 = vrot.lane.b32.xlu0 %v153, 2
        %v171 = vpop.permute.xlu0 %170
        %vm178 = vcmask 146448
        %179 = vst.msk [vmem:[#allocation2 + $0x2] sm:$0xff] %vm178, %v161
        %180 = vst.msk [vmem:[#allocation2 + $0xa] sm:$0xff] %vm178, %v163
        %181 = vst.msk [vmem:[#allocation2 + $0x1a] sm:$0xff] %vm178, %v165
        %182 = vst.msk [vmem:[#allocation2 + $0x22] sm:$0xff] %vm178, %v167
        %183 = vst.msk [vmem:[#allocation2 + $0x32] sm:$0xff] %vm178, %v169
        %184 = vst.msk [vmem:[#allocation2 + $0x3a] sm:$0xff] %vm178, %v171
        %v185 = vld [vmem:[#allocation2] sm:$0xff]
        %v186 = vld [vmem:[#allocation2 + $0x8] sm:$0xff]
        %v187 = vld [vmem:[#allocation2 + $0x10] sm:$0x3]
        %v188 = vld [vmem:[#allocation2 + $0x18] sm:$0xff]
        %v189 = vld [vmem:[#allocation2 + $0x20] sm:$0xff]
        %v190 = vld [vmem:[#allocation2 + $0x28] sm:$0x3]
        %v191 = vld [vmem:[#allocation2 + $0x30] sm:$0xff]
        %v192 = vld [vmem:[#allocation2 + $0x38] sm:$0xff]
        %v193 = vld [vmem:[#allocation2 + $0x40] sm:$0x3]
        %v194 = vmul.f32 %v185, 0.03797616
        %v195 = vmul.f32 %v186, 0.03797616
        %v196 = vmul.f32 %v187, 0.03797616
        %v197 = vmul.f32 %v188, 0.03797616
        %v198 = vmul.f32 %v189, 0.03797616
        %v199 = vmul.f32 %v190, 0.03797616
        %v200 = vmul.f32 %v191, 0.03797616
        %v201 = vmul.f32 %v192, 0.03797616
        %v202 = vmul.f32 %v193, 0.03797616
        %v203 = vmul.f32 %v185, 0.044863533
        %v204 = vmul.f32 %v186, 0.044863533
        %v205 = vmul.f32 %v187, 0.044863533
        %v206 = vmul.f32 %v188, 0.044863533
        %v207 = vmul.f32 %v189, 0.044863533
        %v208 = vmul.f32 %v190, 0.044863533
        %v209 = vmul.f32 %v191, 0.044863533
        %v210 = vmul.f32 %v192, 0.044863533
        %v211 = vmul.f32 %v193, 0.044863533
        %221 = vrot.lane.b32.xlu0 %v203, 127
        %v222 = vpop.permute.xlu0 %221
        %223 = vrot.lane.b32.xlu0 %v204, 127
        %v224 = vpop.permute.xlu0 %223
        %225 = vrot.lane.b32.xlu0 %v205, 127
        %v226 = vpop.permute.xlu0 %225
        %227 = vrot.lane.b32.xlu0 %v206, 127
        %v228 = vpop.permute.xlu0 %227
        %229 = vrot.lane.b32.xlu0 %v207, 127
        %v230 = vpop.permute.xlu0 %229
        %231 = vrot.lane.b32.xlu0 %v208, 127
        %v232 = vpop.permute.xlu0 %231
        %233 = vrot.lane.b32.xlu0 %v209, 127
        %v234 = vpop.permute.xlu0 %233
        %235 = vrot.lane.b32.xlu0 %v210, 127
        %v236 = vpop.permute.xlu0 %235
        %237 = vrot.lane.b32.xlu0 %v211, 127
        %v238 = vpop.permute.xlu0 %237
        %v248 = vadd.f32 %v194, %v222
        %v249 = vadd.f32 %v195, %v224
        %v250 = vadd.f32 %v196, %v226
        %v251 = vadd.f32 %v197, %v228
        %v252 = vadd.f32 %v198, %v230
        %v253 = vadd.f32 %v199, %v232
        %v254 = vadd.f32 %v200, %v234
        %v255 = vadd.f32 %v201, %v236
        %v256 = vadd.f32 %v202, %v238
        %266 = vrot.lane.b32.xlu0 %v194, 126
        %v267 = vpop.permute.xlu0 %266
        %268 = vrot.lane.b32.xlu0 %v195, 126
        %v269 = vpop.permute.xlu0 %268
        %270 = vrot.lane.b32.xlu0 %v196, 126
        %v271 = vpop.permute.xlu0 %270
        %272 = vrot.lane.b32.xlu0 %v197, 126
        %v273 = vpop.permute.xlu0 %272
        %274 = vrot.lane.b32.xlu0 %v198, 126
        %v275 = vpop.permute.xlu0 %274
        %276 = vrot.lane.b32.xlu0 %v199, 126
        %v277 = vpop.permute.xlu0 %276
        %278 = vrot.lane.b32.xlu0 %v200, 126
        %v279 = vpop.permute.xlu0 %278
        %280 = vrot.lane.b32.xlu0 %v201, 126
        %v281 = vpop.permute.xlu0 %280
        %282 = vrot.lane.b32.xlu0 %v202, 126
        %v283 = vpop.permute.xlu0 %282
        %v293 = vadd.f32 %v248, %v267
        %v294 = vadd.f32 %v249, %v269
        %v295 = vadd.f32 %v250, %v271
        %v296 = vadd.f32 %v251, %v273
        %v297 = vadd.f32 %v252, %v275
        %v298 = vadd.f32 %v253, %v277
        %v299 = vadd.f32 %v254, %v279
        %v300 = vadd.f32 %v255, %v281
        %v301 = vadd.f32 %v256, %v283
        %v302 = vld [vmem:[#allocation2 + $0x1] sm:$0xff]
        %v303 = vld [vmem:[#allocation2 + $0x9] sm:$0xff]
        %v304 = vld [vmem:[#allocation2 + $0x11] sm:$0x3]
        %v305 = vld [vmem:[#allocation2 + $0x19] sm:$0xff]
        %v306 = vld [vmem:[#allocation2 + $0x21] sm:$0xff]
        %v307 = vld [vmem:[#allocation2 + $0x29] sm:$0x3]
        %v308 = vld [vmem:[#allocation2 + $0x31] sm:$0xff]
        %v309 = vld [vmem:[#allocation2 + $0x39] sm:$0xff]
        %v310 = vld [vmem:[#allocation2 + $0x41] sm:$0x3]
        %v311 = vmul.f32 %v302, 0.044863533
        %v312 = vmul.f32 %v303, 0.044863533
        %v313 = vmul.f32 %v304, 0.044863533
        %v314 = vmul.f32 %v305, 0.044863533
        %v315 = vmul.f32 %v306, 0.044863533
        %v316 = vmul.f32 %v307, 0.044863533
        %v317 = vmul.f32 %v308, 0.044863533
        %v318 = vmul.f32 %v309, 0.044863533
        %v319 = vmul.f32 %v310, 0.044863533
        %v320 = vadd.f32 %v293, %v311
        %v321 = vadd.f32 %v294, %v312
        %v322 = vadd.f32 %v295, %v313
        %v323 = vadd.f32 %v296, %v314
        %v324 = vadd.f32 %v297, %v315
        %v325 = vadd.f32 %v298, %v316
        %v326 = vadd.f32 %v299, %v317
        %v327 = vadd.f32 %v300, %v318
        %v328 = vadd.f32 %v301, %v319
        %v329 = vmul.f32 %v302, 0.053
        %v330 = vmul.f32 %v303, 0.053
        %v331 = vmul.f32 %v304, 0.053
        %v332 = vmul.f32 %v305, 0.053
        %v333 = vmul.f32 %v306, 0.053
        %v334 = vmul.f32 %v307, 0.053
        %v335 = vmul.f32 %v308, 0.053
        %v336 = vmul.f32 %v309, 0.053
        %v337 = vmul.f32 %v310, 0.053
        %347 = vrot.lane.b32.xlu0 %v329, 127
        %v348 = vpop.permute.xlu0 %347
        %349 = vrot.lane.b32.xlu0 %v330, 127
        %v350 = vpop.permute.xlu0 %349
        %351 = vrot.lane.b32.xlu0 %v331, 127
        %v352 = vpop.permute.xlu0 %351
        %353 = vrot.lane.b32.xlu0 %v332, 127
        %v354 = vpop.permute.xlu0 %353
        %355 = vrot.lane.b32.xlu0 %v333, 127
        %v356 = vpop.permute.xlu0 %355
        %357 = vrot.lane.b32.xlu0 %v334, 127
        %v358 = vpop.permute.xlu0 %357
        %359 = vrot.lane.b32.xlu0 %v335, 127
        %v360 = vpop.permute.xlu0 %359
        %361 = vrot.lane.b32.xlu0 %v336, 127
        %v362 = vpop.permute.xlu0 %361
        %363 = vrot.lane.b32.xlu0 %v337, 127
        %v364 = vpop.permute.xlu0 %363
        %v374 = vadd.f32 %v320, %v348
        %v375 = vadd.f32 %v321, %v350
        %v376 = vadd.f32 %v322, %v352
        %v377 = vadd.f32 %v323, %v354
        %v378 = vadd.f32 %v324, %v356
        %v379 = vadd.f32 %v325, %v358
        %v380 = vadd.f32 %v326, %v360
        %v381 = vadd.f32 %v327, %v362
        %v382 = vadd.f32 %v328, %v364
        %392 = vrot.lane.b32.xlu0 %v311, 126
        %v393 = vpop.permute.xlu0 %392
        %394 = vrot.lane.b32.xlu0 %v312, 126
        %v395 = vpop.permute.xlu0 %394
        %396 = vrot.lane.b32.xlu0 %v313, 126
        %v397 = vpop.permute.xlu0 %396
        %398 = vrot.lane.b32.xlu0 %v314, 126
        %v399 = vpop.permute.xlu0 %398
        %400 = vrot.lane.b32.xlu0 %v315, 126
        %v401 = vpop.permute.xlu0 %400
        %402 = vrot.lane.b32.xlu0 %v316, 126
        %v403 = vpop.permute.xlu0 %402
        %404 = vrot.lane.b32.xlu0 %v317, 126
        %v405 = vpop.permute.xlu0 %404
        %406 = vrot.lane.b32.xlu0 %v318, 126
        %v407 = vpop.permute.xlu0 %406
        %408 = vrot.lane.b32.xlu0 %v319, 126
        %v409 = vpop.permute.xlu0 %408
        %v419 = vadd.f32 %v374, %v393
        %v420 = vadd.f32 %v375, %v395
        %v421 = vadd.f32 %v376, %v397
        %v422 = vadd.f32 %v377, %v399
        %v423 = vadd.f32 %v378, %v401
        %v424 = vadd.f32 %v379, %v403
        %v425 = vadd.f32 %v380, %v405
        %v426 = vadd.f32 %v381, %v407
        %v427 = vadd.f32 %v382, %v409
        %v428 = vld [vmem:[#allocation2 + $0x2] sm:$0xff]
        %v429 = vld [vmem:[#allocation2 + $0xa] sm:$0xff]
        %v430 = vld [vmem:[#allocation2 + $0x12] sm:$0x3]
        %v431 = vld [vmem:[#allocation2 + $0x1a] sm:$0xff]
        %v432 = vld [vmem:[#allocation2 + $0x22] sm:$0xff]
        %v433 = vld [vmem:[#allocation2 + $0x2a] sm:$0x3]
        %v434 = vld [vmem:[#allocation2 + $0x32] sm:$0xff]
        %v435 = vld [vmem:[#allocation2 + $0x3a] sm:$0xff]
        %v436 = vld [vmem:[#allocation2 + $0x42] sm:$0x3]
        %v437 = vmul.f32 %v428, 0.03797616
        %v438 = vmul.f32 %v429, 0.03797616
        %v439 = vmul.f32 %v430, 0.03797616
        %v440 = vmul.f32 %v431, 0.03797616
        %v441 = vmul.f32 %v432, 0.03797616
        %v442 = vmul.f32 %v433, 0.03797616
        %v443 = vmul.f32 %v434, 0.03797616
        %v444 = vmul.f32 %v435, 0.03797616
        %v445 = vmul.f32 %v436, 0.03797616
        %v446 = vadd.f32 %v419, %v437
        %v447 = vadd.f32 %v420, %v438
        %v448 = vadd.f32 %v421, %v439
        %v449 = vadd.f32 %v422, %v440
        %v450 = vadd.f32 %v423, %v441
        %v451 = vadd.f32 %v424, %v442
        %v452 = vadd.f32 %v425, %v443
        %v453 = vadd.f32 %v426, %v444
        %v454 = vadd.f32 %v427, %v445
        %v455 = vmul.f32 %v428, 0.044863533
        %v456 = vmul.f32 %v429, 0.044863533
        %v457 = vmul.f32 %v430, 0.044863533
        %v458 = vmul.f32 %v431, 0.044863533
        %v459 = vmul.f32 %v432, 0.044863533
        %v460 = vmul.f32 %v433, 0.044863533
        %v461 = vmul.f32 %v434, 0.044863533
        %v462 = vmul.f32 %v435, 0.044863533
        %v463 = vmul.f32 %v436, 0.044863533
        %473 = vrot.lane.b32.xlu0 %v455, 127
        %v474 = vpop.permute.xlu0 %473
        %475 = vrot.lane.b32.xlu0 %v456, 127
        %v476 = vpop.permute.xlu0 %475
        %477 = vrot.lane.b32.xlu0 %v457, 127
        %v478 = vpop.permute.xlu0 %477
        %479 = vrot.lane.b32.xlu0 %v458, 127
        %v480 = vpop.permute.xlu0 %479
        %481 = vrot.lane.b32.xlu0 %v459, 127
        %v482 = vpop.permute.xlu0 %481
        %483 = vrot.lane.b32.xlu0 %v460, 127
        %v484 = vpop.permute.xlu0 %483
        %485 = vrot.lane.b32.xlu0 %v461, 127
        %v486 = vpop.permute.xlu0 %485
        %487 = vrot.lane.b32.xlu0 %v462, 127
        %v488 = vpop.permute.xlu0 %487
        %489 = vrot.lane.b32.xlu0 %v463, 127
        %v490 = vpop.permute.xlu0 %489
        %v500 = vadd.f32 %v446, %v474
        %v501 = vadd.f32 %v447, %v476
        %v502 = vadd.f32 %v448, %v478
        %v503 = vadd.f32 %v449, %v480
        %v504 = vadd.f32 %v450, %v482
        %v505 = vadd.f32 %v451, %v484
        %v506 = vadd.f32 %v452, %v486
        %v507 = vadd.f32 %v453, %v488
        %v508 = vadd.f32 %v454, %v490
        %518 = vrot.lane.b32.xlu0 %v437, 126
        %v519 = vpop.permute.xlu0 %518
        %520 = vrot.lane.b32.xlu0 %v438, 126
        %v521 = vpop.permute.xlu0 %520
        %522 = vrot.lane.b32.xlu0 %v439, 126
        %v523 = vpop.permute.xlu0 %522
        %524 = vrot.lane.b32.xlu0 %v440, 126
        %v525 = vpop.permute.xlu0 %524
        %526 = vrot.lane.b32.xlu0 %v441, 126
        %v527 = vpop.permute.xlu0 %526
        %528 = vrot.lane.b32.xlu0 %v442, 126
        %v529 = vpop.permute.xlu0 %528
        %530 = vrot.lane.b32.xlu0 %v443, 126
        %v531 = vpop.permute.xlu0 %530
        %532 = vrot.lane.b32.xlu0 %v444, 126
        %v533 = vpop.permute.xlu0 %532
        %534 = vrot.lane.b32.xlu0 %v445, 126
        %v535 = vpop.permute.xlu0 %534
        %v545 = vadd.f32 %v500, %v519
        %v546 = vadd.f32 %v501, %v521
        %v547 = vadd.f32 %v502, %v523
        %v548 = vadd.f32 %v503, %v525
        %v549 = vadd.f32 %v504, %v527
        %v550 = vadd.f32 %v505, %v529
        %v551 = vadd.f32 %v506, %v531
        %v552 = vadd.f32 %v507, %v533
        %v553 = vadd.f32 %v508, %v535
        %vm554 = vcmask 146432
        %555 = vst.msk [vmem:[%s136] sm:$0xff] %vm554, %v545
        %556 = vst.msk [vmem:[%s136 + $0x8] sm:$0xff] %vm554, %v546
        %vm557 = vcmask 140288
        %558 = vst.msk [vmem:[%s136 + $0x10] sm:$0x3] %vm557, %v547
        %559 = vst.msk [vmem:[%s136 + $0x18] sm:$0xff] %vm554, %v548
        %560 = vst.msk [vmem:[%s136 + $0x20] sm:$0xff] %vm554, %v549
        %561 = vst.msk [vmem:[%s136 + $0x28] sm:$0x3] %vm557, %v550
        %562 = vst.msk [vmem:[%s136 + $0x30] sm:$0xff] %vm554, %v551
        %563 = vst.msk [vmem:[%s136 + $0x38] sm:$0xff] %vm554, %v552
        %564 = vst.msk [vmem:[%s136 + $0x40] sm:$0x3] %vm557, %v553
        %p565 = scmp.lt.s32.totalorder %s15, 1
        %s566 = scalar_select %p565, %s15, 1
        %s567 = smul.addr %s566, 9
        %s568 = smul.addr %s567, 8
        %s569 = scalar_lea.vmem %s1, %s568
        // Predicated region
        $region29: #{tpu_custom_call.1} parent=23 // pred_check
          %p570 = pneg %p59
        $region30: #{tpu_custom_call.1} parent=23 // pred_check_branch
          %572 = sbr.rel (%p570) target = $region32
        $region31: #{tpu_custom_call.1} parent=23 // pred_region
          _
        $region32: #{tpu_custom_call.1} parent=23 // pred_fallthru
          _
      $region24: #{tpu_custom_call.1} parent=5 // pred_fallthru
        _
      %p573 = scmp.le.s32.totalorder 2, %s10
      // Predicated region
      $region33: #{tpu_custom_call.1} parent=5 // pred_check
        %p574 = pneg %p573
      $region34: #{tpu_custom_call.1} parent=5 // pred_check_branch
        %576 = sbr.rel (%p574) target = $region36
      $region35: #{tpu_custom_call.1} parent=5 // pred_region
        %s577 = ssub.s32 %s10, 2
        // Predicated region
        $region37: #{tpu_custom_call.1} parent=35 // pred_check
          %p578 = pneg %p65
        $region38: #{tpu_custom_call.1} parent=35 // pred_check_branch
          %580 = sbr.rel (%p578) target = $region40
        $region39: #{tpu_custom_call.1} parent=35 // pred_region
          %p581 = scmp.lt.s32.totalorder %s16, 1
          %s582 = scalar_select %p581, %s16, 1
          %s583 = smul.addr %s582, 9
          %s584 = smul.addr %s583, 8
          %s585 = scalar_lea.vmem %s1, %s584
        $region40: #{tpu_custom_call.1} parent=35 // pred_fallthru
          _
      $region36: #{tpu_custom_call.1} parent=5 // pred_fallthru
        _
    $region6: #{tpu_custom_call.1} parent=1 // loop_footer
      %s14 = sadd.s32 1, %s10
    $region7: #{tpu_custom_call.1} parent=1 // loop_footer_branch
      %9 = sbr.rel target = $region3
    $region8: #{tpu_custom_call.1} parent=1 // loop_exit
      _
    %586 = vsyncpa [#allocation4], 1
    %s587 = scalar_lea.sflag [#allocation4], 1
    %588 = vsyncpa %s587, 1

</llo_original>
